<compile_context>
chip_gen: v7x
topology: tpu7x:2x2x1
jax: 0.10.0
libtpu: 0.0.40
codegen_flags: <defaults>
</compile_context>

<pallas_src>
import functools
import math

import jax
import jax.numpy as jnp
from jax.experimental import pallas as pl
from jax.experimental.pallas import tpu as pltpu


def _round_up(x, m):
    return ((x + m - 1) // m) * m


def _symlog_twohot_kernel(logits_ref, target_ref, out_ref, *,
                          num_classes, lower_bound, inv_bin_length,
                          total_rows, tile_rows, reduce_mean):
    """Two-hot cross entropy for one (tile_rows, C) block."""
    logits = logits_ref[...].astype(jnp.float32)               # (TN, C)
    t = target_ref[...].astype(jnp.float32)                    # (TN, 1)

    # symlog(target).  (torch.sign(0) == 0, but log1p(0) == 0, so the
    # where-based sign yields an identical product.)
    st = jnp.where(t >= 0.0, 1.0, -1.0) * jnp.log1p(jnp.abs(t))

    # Closed-form bucketize: bins = linspace(lower, upper, C) is affine, so
    # the fractional bin position is (st - lower) / bin_length.  Clipping to
    # [0, C-1] reproduces the edge-bin behavior of the previous clipped
    # two-hot (graceful clamp; PyTorch would raise at st == lower exactly).
    frac = (st - lower_bound) * inv_bin_length                  # (TN, 1)
    frac = jnp.clip(frac, 0.0, float(num_classes - 1))

    # Hat-function two-hot: tp[c] = relu(1 - |frac - c|).  Algebraically
    # identical to the idx/(1-w,w) nested-select construction, with no int
    # iota/cast, no compares and no per-row lane broadcasts of w / 1-w.
    tn = logits.shape[0]
    cls = jax.lax.broadcasted_iota(
        jnp.int32, (tn, num_classes), 1).astype(jnp.float32)
    target_prob = jnp.maximum(1.0 - jnp.abs(frac - cls), 0.0)   # (TN, C)

    # loss = -sum(tp * log_softmax(z)) = logsumexp(z) - sum(tp * z)
    # (sum(tp) == 1), so log-probs are never materialized.
    m = jnp.max(logits, axis=-1, keepdims=True)                 # (TN, 1)
    z = logits - m                                              # (TN, C)
    lse = jnp.log(jnp.sum(jnp.exp(z), axis=-1, keepdims=True))  # (TN, 1)
    loss = lse - jnp.sum(target_prob * z, axis=-1, keepdims=True)  # (TN, 1)

    if reduce_mean:
        # Mask the ragged tail rows of the final block out of the partial sum
        # (tail rows hold stale VMEM; select keeps their NaN/Inf out).
        row = jax.lax.broadcasted_iota(jnp.int32, (tn, 1), 0)
        gstart = pl.program_id(0) * tile_rows
        valid = (gstart + row) < total_rows
        partial = jnp.sum(jnp.where(valid, loss, 0.0), axis=0,
                          keepdims=True)                        # (1, 1)
        row8 = jax.lax.broadcasted_iota(jnp.int32, (8, 1), 0)
        out_ref[...] = jnp.where(row8 == 0, partial, 0.0).astype(out_ref.dtype)
    else:
        out_ref[...] = loss.astype(out_ref.dtype)


def symlog_two_hot_loss(output, target, *, num_classes, lower_bound, upper_bound,
                        reduce=True, tile_n=2048):
    """JAX/Pallas equivalent of SymLogTwoHotLoss.forward(output, target, reduce)."""
    assert output.shape[-1] == num_classes
    lead_shape = output.shape[:-1]
    n = math.prod(lead_shape) if lead_shape else 1

    # Native dtype, no padding copy: the kernel upcasts internally and the
    # grid handles a ragged final row block, so logits are read from HBM once
    # (bf16 logits halve the dominant HBM stream).
    logits2d = output.reshape(n, num_classes)
    target2d = target.reshape(n, 1)

    # Rows per grid step (multiple of 8).  Keep >= 2 grid steps when there is
    # enough work so ("parallel",) actually shards across both TCs on v7x.
    tile = min(tile_n, _round_up(n, 8))
    if n > 8 and pl.cdiv(n, tile) < 2:
        tile = max(8, _round_up(pl.cdiv(n, 2), 8))
    grid = pl.cdiv(n, tile)

    bin_length = (upper_bound - lower_bound) / (num_classes - 1)
    kernel = functools.partial(
        _symlog_twohot_kernel,
        num_classes=num_classes,
        lower_bound=float(lower_bound),
        inv_bin_length=1.0 / bin_length,
        total_rows=n,
        tile_rows=tile,
        reduce_mean=reduce,
    )

    if reduce:
        # One (8,1) block per grid step; partial sum in row 0, zeros elsewhere.
        out_shape = jax.ShapeDtypeStruct((grid * 8, 1), jnp.float32)
        out_spec = pl.BlockSpec((8, 1), lambda i: (i, 0))
    else:
        out_shape = jax.ShapeDtypeStruct((n, 1), jnp.float32)
        out_spec = pl.BlockSpec((tile, 1), lambda i: (i, 0))

    # Size the VMEM limit from the actual per-step need (double-buffered
    # inputs/outputs + f32 elementwise temporaries) instead of a blanket cap.
    lane_c = _round_up(num_classes, 128)
    vmem_need = (2 * tile * lane_c * jnp.dtype(output.dtype).itemsize   # logits
                 + 2 * tile * 128 * jnp.dtype(target.dtype).itemsize    # target
                 + 6 * tile * lane_c * 4                                # temporaries
                 + (2 * 8 * 128 * 4 if reduce else 2 * tile * 128 * 4)) # output
    vmem_limit = _round_up(vmem_need, 1 << 20) + (4 << 20)

    result = pl.pallas_call(
        kernel,
        out_shape=out_shape,
        grid_spec=pltpu.PrefetchScalarGridSpec(
            num_scalar_prefetch=0,
            grid=(grid,),
            in_specs=[
                # C == num_classes is the full lane extent; padding it to a
                # multiple of 128 in the wrapper would cost a full HBM copy
                # of the logits, which outweighs the ragged-lane-tail cost.
                pl.BlockSpec((tile, num_classes), lambda i: (i, 0)),
                pl.BlockSpec((tile, 1), lambda i: (i, 0)),
            ],
            out_specs=out_spec,
        ),
        compiler_params=pltpu.CompilerParams(
            dimension_semantics=("parallel",),   # row tiles shard across TCs
            vmem_limit_bytes=int(vmem_limit),
        ),
    )(logits2d, target2d)

    if reduce:
        # Tiny (grid*8, 1) partials array; rows 1..7 of each block are zero.
        return jnp.sum(result) / n
    return result.reshape(*lead_shape, 1)


def _symlog(x):
    return jnp.sign(x) * jnp.log1p(jnp.abs(x))


def _reference_loss(output, target, *, num_classes, lower_bound, upper_bound, reduce=True):
    """Pure-JAX reference mirroring the PyTorch forward (searchsorted + one_hot)."""
    bins = jnp.linspace(lower_bound, upper_bound, num_classes, dtype=jnp.float32)
    bin_length = (upper_bound - lower_bound) / (num_classes - 1)
    t = _symlog(jnp.squeeze(target, axis=-1).astype(jnp.float32))
    idx = jnp.searchsorted(bins, t, side="left")
    diff = t - bins[idx - 1]
    w = jnp.clip(diff / bin_length, 0.0, 1.0)[..., None]
    lower = jax.nn.one_hot(idx - 1, num_classes, dtype=jnp.float32)
    upper = jax.nn.one_hot(idx, num_classes, dtype=jnp.float32)
    tp = (1.0 - w) * lower + w * upper
    logp = jax.nn.log_softmax(output.astype(jnp.float32), axis=-1)
    loss = -(tp * logp).sum(-1, keepdims=True)
    return loss.mean() if reduce else loss


if __name__ == "__main__":
    NUM_CLASSES = 255
    LOWER, UPPER = -20.0, 20.0

    key = jax.random.PRNGKey(0)
    k1, k2, k3, k4 = jax.random.split(key, 4)

    # Case 1: small batch, reduce=True (in-kernel partial sums, forced 2-step
    # grid so the megacore-friendly path is exercised).
    output1 = jax.random.normal(k1, (2, 8, NUM_CLASSES), dtype=jnp.float32)
    target1 = jax.random.uniform(k2, (2, 8, 1), minval=-5.0, maxval=5.0,
                                 dtype=jnp.float32)
    loss1 = symlog_two_hot_loss(output1, target1, num_classes=NUM_CLASSES,
                                lower_bound=LOWER, upper_bound=UPPER, reduce=True)
    loss1 = jax.block_until_ready(loss1)
    ref1 = _reference_loss(output1, target1, num_classes=NUM_CLASSES,
                           lower_bound=LOWER, upper_bound=UPPER, reduce=True)
    assert jnp.allclose(loss1, ref1, atol=1e-4, rtol=1e-4), (loss1, ref1)

    # Case 2: row count (21) not a multiple of the tile -> exercises the
    # ragged final block and a multi-step grid, reduce=False.
    output2 = jax.random.normal(k3, (3, 7, NUM_CLASSES), dtype=jnp.float32)
    target2 = jax.random.uniform(k4, (3, 7, 1), minval=-4.0, maxval=4.0,
                                 dtype=jnp.float32)
    loss2 = symlog_two_hot_loss(output2, target2, num_classes=NUM_CLASSES,
                                lower_bound=LOWER, upper_bound=UPPER,
                                reduce=False, tile_n=8)
    loss2 = jax.block_until_ready(loss2)
    ref2 = _reference_loss(output2, target2, num_classes=NUM_CLASSES,
                           lower_bound=LOWER, upper_bound=UPPER, reduce=False)
    assert loss2.shape == ref2.shape == (3, 7, 1)
    assert jnp.allclose(loss2, ref2, atol=5e-4, rtol=1e-4), (loss2, ref2)

    # Case 3: ragged rows + reduce=True -> verifies the in-kernel tail-row
    # masking of the partial sums.
    loss3 = symlog_two_hot_loss(output2, target2, num_classes=NUM_CLASSES,
                                lower_bound=LOWER, upper_bound=UPPER,
                                reduce=True, tile_n=8)
    loss3 = jax.block_until_ready(loss3)
    ref3 = _reference_loss(output2, target2, num_classes=NUM_CLASSES,
                           lower_bound=LOWER, upper_bound=UPPER, reduce=True)
    assert jnp.allclose(loss3, ref3, atol=5e-4, rtol=1e-4), (loss3, ref3)

    # Case 4: bf16 logits streamed natively (HBM-traffic lever); math is f32
    # inside the kernel, reference upcasts the same bf16 values.
    output4 = output1.astype(jnp.bfloat16)
    loss4 = symlog_two_hot_loss(output4, target1, num_classes=NUM_CLASSES,
                                lower_bound=LOWER, upper_bound=UPPER, reduce=True)
    loss4 = jax.block_until_ready(loss4)
    ref4 = _reference_loss(output4, target1, num_classes=NUM_CLASSES,
                           lower_bound=LOWER, upper_bound=UPPER, reduce=True)
    assert jnp.allclose(loss4, ref4, atol=5e-4, rtol=1e-4), (loss4, ref4)

    print("KERNEL_OK")
</pallas_src>

<mosaic_0001>
module attributes {stable_mosaic.version = 11 : i64} {
  func.func @_symlog_twohot_kernel(%arg0: i32, %arg1: memref<8x255xf32, #tpu.memory_space<vmem>>, %arg2: memref<8x1xf32, #tpu.memory_space<vmem>>, %arg3: memref<8x1xf32, #tpu.memory_space<vmem>>) attributes {dimension_semantics = [#tpu.dimension_semantics<parallel>], iteration_bounds = array<i64: 2>, scalar_prefetch = 0 : i64, scratch_operands = 0 : i64, tpu.core_type = #tpu.core_type<tc>, window_params = [{transform_indices = @transform_0, window_bounds = array<i64: 8, 255>}, {transform_indices = @transform_1, window_bounds = array<i64: 8, 1>}, {transform_indices = @transform_2, window_bounds = array<i64: 8, 1>}]} {
    %c0 = arith.constant 0 : index
    %c0_0 = arith.constant 0 : index
    %0 = vector.load %arg1[%c0, %c0_0] : memref<8x255xf32, #tpu.memory_space<vmem>>, vector<8x255xf32>
    %c0_1 = arith.constant 0 : index
    %c0_2 = arith.constant 0 : index
    %1 = vector.load %arg2[%c0_1, %c0_2] : memref<8x1xf32, #tpu.memory_space<vmem>>, vector<8x1xf32>
    %cst = arith.constant 0.000000e+00 : f32
    %2 = vector.broadcast %cst : f32 to vector<8x1xf32>
    %3 = arith.cmpf oge, %1, %2 : vector<8x1xf32>
    %cst_3 = arith.constant 1.000000e+00 : f32
    %cst_4 = arith.constant -1.000000e+00 : f32
    %4 = vector.broadcast %cst_3 : f32 to vector<8x1xf32>
    %5 = vector.broadcast %cst_4 : f32 to vector<8x1xf32>
    %6 = arith.select %3, %4, %5 : vector<8x1xi1>, vector<8x1xf32>
    %7 = math.absf %1 : vector<8x1xf32>
    %8 = math.log1p %7 : vector<8x1xf32>
    %9 = arith.mulf %6, %8 : vector<8x1xf32>
    %cst_5 = arith.constant -2.000000e+01 : f32
    %10 = vector.broadcast %cst_5 : f32 to vector<8x1xf32>
    %11 = arith.subf %9, %10 : vector<8x1xf32>
    %cst_6 = arith.constant 6.350000e+00 : f32
    %12 = vector.broadcast %cst_6 : f32 to vector<8x1xf32>
    %13 = arith.mulf %11, %12 : vector<8x1xf32>
    %cst_7 = arith.constant 0.000000e+00 : f32
    %cst_8 = arith.constant 2.540000e+02 : f32
    %14 = vector.broadcast %cst_7 : f32 to vector<8x1xf32>
    %15 = arith.maximumf %14, %13 : vector<8x1xf32>
    %16 = vector.broadcast %cst_8 : f32 to vector<8x1xf32>
    %17 = arith.minimumf %16, %15 : vector<8x1xf32>
    %18 = tpu.iota {dimensions = array<i32: 1>} : vector<8x255xi32>
    %19 = arith.sitofp %18 : vector<8x255xi32> to vector<8x255xf32>
    %20 = vector.broadcast %17 : vector<8x1xf32> to vector<8x255xf32>
    %21 = arith.subf %20, %19 : vector<8x255xf32>
    %22 = math.absf %21 : vector<8x255xf32>
    %cst_9 = arith.constant 1.000000e+00 : f32
    %23 = vector.broadcast %cst_9 : f32 to vector<8x255xf32>
    %24 = arith.subf %23, %22 : vector<8x255xf32>
    %cst_10 = arith.constant 0.000000e+00 : f32
    %25 = vector.broadcast %cst_10 : f32 to vector<8x255xf32>
    %26 = arith.maximumf %24, %25 : vector<8x255xf32>
    %cst_11 = arith.constant dense<0xFF800000> : vector<8xf32>
    %27 = vector.multi_reduction <maximumf>, %0, %cst_11 [1] : vector<8x255xf32> to vector<8xf32>
    %28 = vector.shape_cast %27 : vector<8xf32> to vector<8x1xf32>
    %29 = vector.broadcast %28 : vector<8x1xf32> to vector<8x255xf32>
    %30 = arith.subf %0, %29 : vector<8x255xf32>
    %31 = math.exp %30 : vector<8x255xf32>
    %cst_12 = arith.constant dense<0.000000e+00> : vector<8xf32>
    %32 = vector.multi_reduction <add>, %31, %cst_12 [1] : vector<8x255xf32> to vector<8xf32>
    %33 = vector.shape_cast %32 : vector<8xf32> to vector<8x1xf32>
    %34 = math.log %33 : vector<8x1xf32>
    %35 = arith.mulf %26, %30 : vector<8x255xf32>
    %cst_13 = arith.constant dense<0.000000e+00> : vector<8xf32>
    %36 = vector.multi_reduction <add>, %35, %cst_13 [1] : vector<8x255xf32> to vector<8xf32>
    %37 = vector.shape_cast %36 : vector<8xf32> to vector<8x1xf32>
    %38 = arith.subf %34, %37 : vector<8x1xf32>
    %39 = tpu.iota {dimensions = array<i32: 0>} : vector<8x1xi32>
    %c8_i32 = arith.constant 8 : i32
    %40 = arith.muli %arg0, %c8_i32 : i32
    %41 = vector.broadcast %40 : i32 to vector<8x1xi32>
    %42 = arith.addi %41, %39 : vector<8x1xi32>
    %c16_i32 = arith.constant 16 : i32
    %43 = vector.broadcast %c16_i32 : i32 to vector<8x1xi32>
    %44 = arith.cmpi slt, %42, %43 : vector<8x1xi32>
    %cst_14 = arith.constant 0.000000e+00 : f32
    %45 = vector.broadcast %cst_14 : f32 to vector<8x1xf32>
    %46 = arith.select %44, %38, %45 : vector<8x1xi1>, vector<8x1xf32>
    %cst_15 = arith.constant dense<0.000000e+00> : vector<1xf32>
    %47 = vector.multi_reduction <add>, %46, %cst_15 [0] : vector<8x1xf32> to vector<1xf32>
    %48 = vector.shape_cast %47 : vector<1xf32> to vector<1x1xf32>
    %49 = tpu.iota {dimensions = array<i32: 0>} : vector<8x1xi32>
    %c0_i32 = arith.constant 0 : i32
    %50 = vector.broadcast %c0_i32 : i32 to vector<8x1xi32>
    %51 = arith.cmpi eq, %49, %50 : vector<8x1xi32>
    %cst_16 = arith.constant 0.000000e+00 : f32
    %52 = vector.shape_cast %48 : vector<1x1xf32> to vector<1x1xf32>
    %53 = vector.broadcast %52 : vector<1x1xf32> to vector<8x1xf32>
    %54 = vector.broadcast %cst_16 : f32 to vector<8x1xf32>
    %55 = arith.select %51, %53, %54 : vector<8x1xi1>, vector<8x1xf32>
    %c0_17 = arith.constant 0 : index
    %c0_18 = arith.constant 0 : index
    %56 = vector.load %arg3[%c0_17, %c0_18] : memref<8x1xf32, #tpu.memory_space<vmem>>, vector<8x1xf32>
    tpu.vector_store %arg3[%c0_17, %c0_18], %55 {strides = array<i32>} : memref<8x1xf32, #tpu.memory_space<vmem>>, vector<8x1xf32>,
    return
  }
  func.func @transform_0(%arg0: i32) -> (i32, i32) {
    %c0_i32 = arith.constant 0 : i32
    %c0_i32_0 = arith.constant 0 : i32
    return %arg0, %c0_i32 : i32, i32
  }
  func.func @transform_1(%arg0: i32) -> (i32, i32) {
    %c0_i32 = arith.constant 0 : i32
    %c0_i32_0 = arith.constant 0 : i32
    return %arg0, %c0_i32 : i32, i32
  }
  func.func @transform_2(%arg0: i32) -> (i32, i32) {
    %c0_i32 = arith.constant 0 : i32
    %c0_i32_0 = arith.constant 0 : i32
    return %arg0, %c0_i32 : i32, i32
  }
}

</mosaic_0001>

<llo_original>
// kernel: tpu_custom_call.1
$region0: #{tpu_custom_call.1}
  #allocation0 [shape = 'u32[]', space=smem, size = 0x4, offset = 0x4, fixed_abs, tag = 'smem constant byte address 0x4 - core index']
  #allocation1 [shape = 'u32[144,128]{1,0:T(1,128)}', space=vmem, size = 0x12000, scoped, tag = 'internal scratch']
  %s0 = inlined_call_operand.hbm [shape: f32[16,255], index: 0, kind: input, shape index: {}]
  %s1 = inlined_call_operand.vmem [shape: f32[16,1], index: 1, kind: input, shape index: {}]
  %s2 = inlined_call_operand.vmem [shape: f32[16,1], index: 2, kind: output, shape index: {}]
  %s3 = sld [smem:[#allocation0]]
  $region45: #{tpu_custom_call.1} parent=0
    _
  %s5 = ssub.s32 1, %s3
  %s6 = scalar_select 0, %s5, %s3
  $region1: #{tpu_custom_call.1} parent=0
    #allocation2 [shape = 'u8[16384]{0}', space=vmem, size = 0x4000, scoped, tag = 'input window, operand 0']
    #allocation3 [shape = 's32[2]{0}', space=sflag, size = 0x8, scoped, tag = 'scoped memory for tpu_custom_call.1']
    %7 = vsyncpa [#allocation3], 0
    %s8 = scalar_lea.sflag [#allocation3], 1
    %9 = vsyncpa %s8, 0
    loop: start=0, step=1, limit=4
    $region2: #{tpu_custom_call.1} parent=1 // loop_pre_header
      _
    $region3: #{tpu_custom_call.1} parent=1 // loop_header
      %s11 = sphi 0, %s15
      %p12 = scmp.ge.s32.totalorder %s11, 4
      %s21 = sphi 0, %s23
      %s24 = sphi 0, %s21
      %s25 = sphi 0, %s24
      %s41 = sphi 0, %s25
      %s47 = sphi 0, %s49
      %s50 = sphi 0, %s47
      %s51 = sphi 0, %s50
      %s67 = sphi 0, %s51
      %s73 = sphi 0, %s75
      %s76 = sphi 0, %s73
      %s77 = sphi 0, %s76
      %s93 = sphi 0, %s77
    $region4: #{tpu_custom_call.1} parent=1 // loop_header_branch
      %14 = sbr.rel (%p12) target = $region8
    $region5: #{tpu_custom_call.1} parent=1 // loop_body
      %s16 = ssub.s32 %s11, 1
      %s17 = ssub.s32 %s11, 2
      %s18 = sadd.s32 %s11, 1
      %s19 = ssub.s32 %s11, %s18
      %p20 = scmp.eq.s32.totalorder %s19, 0
      %s22 = sadd.s32 %s21, 1
      %s23 = scalar_select %p20, %s21, %s22
      %p26 = pneg %p20
      %p27 = scmp.eq.s32.totalorder %s11, 1
      %p28 = por %p26, %p27
      %p29 = scmp.ne.s32.totalorder %s21, %s24
      %p30 = scmp.eq.s32.totalorder %s11, 0
      %p31 = por %p29, %p30
      %p32 = scmp.ne.s32.totalorder %s21, %s24
      %p33 = scmp.eq.s32.totalorder %s16, 1
      %p34 = por %p32, %p33
      %p35 = scmp.ne.s32.totalorder %s24, %s25
      %p36 = scmp.eq.s32.totalorder %s16, 0
      %p37 = por %p35, %p36
      %p38 = scmp.ne.s32.totalorder %s24, %s25
      %p39 = scmp.eq.s32.totalorder %s17, 1
      %p40 = por %p38, %p39
      %p42 = scmp.ne.s32.totalorder %s25, %s41
      %p43 = scmp.eq.s32.totalorder %s17, 0
      %p44 = por %p42, %p43
      %s45 = ssub.s32 %s11, %s18
      %p46 = scmp.eq.s32.totalorder %s45, 0
      %s48 = sadd.s32 %s47, 1
      %s49 = scalar_select %p46, %s47, %s48
      %p52 = pneg %p46
      %p53 = scmp.eq.s32.totalorder %s11, 1
      %p54 = por %p52, %p53
      %p55 = scmp.ne.s32.totalorder %s47, %s50
      %p56 = scmp.eq.s32.totalorder %s11, 0
      %p57 = por %p55, %p56
      %p58 = scmp.ne.s32.totalorder %s47, %s50
      %p59 = scmp.eq.s32.totalorder %s16, 1
      %p60 = por %p58, %p59
      %p61 = scmp.ne.s32.totalorder %s50, %s51
      %p62 = scmp.eq.s32.totalorder %s16, 0
      %p63 = por %p61, %p62
      %p64 = scmp.ne.s32.totalorder %s50, %s51
      %p65 = scmp.eq.s32.totalorder %s17, 1
      %p66 = por %p64, %p65
      %p68 = scmp.ne.s32.totalorder %s51, %s67
      %p69 = scmp.eq.s32.totalorder %s17, 0
      %p70 = por %p68, %p69
      %s71 = ssub.s32 %s11, %s18
      %p72 = scmp.eq.s32.totalorder %s71, 0
      %s74 = sadd.s32 %s73, 1
      %s75 = scalar_select %p72, %s73, %s74
      %p78 = pneg %p72
      %p79 = scmp.eq.s32.totalorder %s11, 1
      %p80 = por %p78, %p79
      %p81 = scmp.ne.s32.totalorder %s73, %s76
      %p82 = scmp.eq.s32.totalorder %s11, 0
      %p83 = por %p81, %p82
      %p84 = scmp.ne.s32.totalorder %s73, %s76
      %p85 = scmp.eq.s32.totalorder %s16, 1
      %p86 = por %p84, %p85
      %p87 = scmp.ne.s32.totalorder %s76, %s77
      %p88 = scmp.eq.s32.totalorder %s16, 0
      %p89 = por %p87, %p88
      %p90 = scmp.ne.s32.totalorder %s76, %s77
      %p91 = scmp.eq.s32.totalorder %s17, 1
      %p92 = por %p90, %p91
      %p94 = scmp.ne.s32.totalorder %s77, %s93
      %p95 = scmp.eq.s32.totalorder %s17, 0
      %p96 = por %p94, %p95
      %p97 = scmp.le.s32.totalorder 1, %s11
      %p98 = scmp.lt.s32.totalorder %s11, 3
      %p99 = pnand %p97, %p98
      %p100 = pneg %p99
      // Predicated region
      $region9: #{tpu_custom_call.1} parent=5 // pred_check
        _
      $region10: #{tpu_custom_call.1} parent=5 // pred_check_branch
        %102 = sbr.rel (%p99) target = $region12
      $region11: #{tpu_custom_call.1} parent=5 // pred_region
        %s103 = ssub.s32 %s11, 1
      $region12: #{tpu_custom_call.1} parent=5 // pred_fallthru
        _
      %p104 = scmp.lt.s32.totalorder %s11, 2
      // Predicated region
      $region13: #{tpu_custom_call.1} parent=5 // pred_check
        %p105 = pneg %p104
      $region14: #{tpu_custom_call.1} parent=5 // pred_check_branch
        %107 = sbr.rel (%p105) target = $region16
      $region15: #{tpu_custom_call.1} parent=5 // pred_region
        // Predicated region
        $region17: #{tpu_custom_call.1} parent=15 // pred_check
          %p108 = pneg %p31
        $region18: #{tpu_custom_call.1} parent=15 // pred_check_branch
          %110 = sbr.rel (%p108) target = $region20
        $region19: #{tpu_custom_call.1} parent=15 // pred_region
          %s111 = sand.u32 %s21, 1
          %s112 = scalar_lea.sflag [#allocation3], %s111
          %s113 = sand.u32 %s21, 1
          %s114 = smul.addr %s113, 16
          %s115 = scalar_lea.vmem [#allocation2], %s114
          %s117 = ssub.s32 256, 256
          %118 = vsyncadd %s112, %s117
          %s119 = smul.addr %s11, 2
          %s120 = smul.addr %s119, 128
          %s121 = scalar_lea.hbm %s0, %s120
          %s123 = sshll.u32 %s115, 4
          %s124 = int_to_ptr.vmem [resolvable:$true] %s123
          %126 = dma.hbm_to_vmem [thread:$0]  %s121, 256, %s124, %s112
        $region20: #{tpu_custom_call.1} parent=15 // pred_fallthru
          _
        // Predicated region
        $region21: #{tpu_custom_call.1} parent=15 // pred_check
          %p127 = pneg %p57
        $region22: #{tpu_custom_call.1} parent=15 // pred_check_branch
          %129 = sbr.rel (%p127) target = $region24
        $region23: #{tpu_custom_call.1} parent=15 // pred_region
          %p130 = scmp.lt.s32.totalorder %s11, 1
          %s131 = scalar_select %p130, %s11, 1
          %s132 = smul.addr %s131, 8
          %s133 = scalar_lea.vmem %s1, %s132
        $region24: #{tpu_custom_call.1} parent=15 // pred_fallthru
          _
      $region16: #{tpu_custom_call.1} parent=5 // pred_fallthru
        _
      %p134 = scmp.le.s32.totalorder 1, %s11
      %p135 = scmp.lt.s32.totalorder %s11, 3
      %p136 = pnand %p134, %p135
      %p137 = pneg %p136
      // Predicated region
      $region25: #{tpu_custom_call.1} parent=5 // pred_check
        _
      $region26: #{tpu_custom_call.1} parent=5 // pred_check_branch
        %139 = sbr.rel (%p136) target = $region28
      $region27: #{tpu_custom_call.1} parent=5 // pred_region
        %s140 = ssub.s32 %s11, 1
        %s141 = sand.u32 %s24, 1
        %s142 = scalar_lea.sflag [#allocation3], %s141
        %s143 = sand.u32 %s24, 1
        %s144 = smul.addr %s143, 16
        %s145 = scalar_lea.vmem [#allocation2], %s144
        // Predicated region
        $region29: #{tpu_custom_call.1} parent=27 // pred_check
          %p146 = pneg %p37
        $region30: #{tpu_custom_call.1} parent=27 // pred_check_branch
          %148 = sbr.rel (%p146) target = $region32
        $region31: #{tpu_custom_call.1} parent=27 // pred_region
          %149 = dma.done %s142, 256
        $region32: #{tpu_custom_call.1} parent=27 // pred_fallthru
          _
        %s150 = sand.u32 %s24, 1
        %s151 = scalar_lea.sflag [#allocation3], %s150
        %s152 = sand.u32 %s24, 1
        %s153 = smul.addr %s152, 16
        %s154 = scalar_lea.vmem [#allocation2], %s153
        %p155 = pneg %p37
        %p156 = pneg %p34
        %p157 = scmp.lt.s32.totalorder %s16, 1
        %s158 = scalar_select %p157, %s16, 1
        %s159 = smul.addr %s158, 8
        %s160 = scalar_lea.vmem %s1, %s159
        %p161 = pneg %p63
        %p162 = pneg %p60
        %p163 = pneg %p89
        %p164 = pneg %p86
        %p165 = scmp.lt.s32.totalorder %s16, 1
        %s166 = scalar_select %p165, %s16, 1
        %s167 = smul.addr %s166, 8
        %s168 = scalar_lea.vmem %s2, %s167
        %p169 = scmp.lt.s32.totalorder %s16, 1
        %s170 = scalar_select %p169, %s16, 1
        %s171 = smul.addr %s170, 8
        %s172 = scalar_lea.vmem %s1, %s171
        %p173 = scmp.lt.s32.totalorder %s16, 1
        %s174 = scalar_select %p173, %s16, 1
        %s175 = smul.addr %s174, 8
        %s176 = scalar_lea.vmem %s2, %s175
        %v177 = vld [vmem:[%s145] sm:$0xff]
        %v178 = vld [vmem:[%s145 + $0x8] sm:$0xff]
        %v179 = vld [vmem:[%s172] sm:$0xff]
        %vm180 = vcmp.ge.f32.partialorder %v179, 0.0
        %v181 = vsel %vm180, 1.0, -1.0
        %v182 = vand.u32 2147483647, %v179
        %v183 = vadd.f32 %v182, 1.0
        %v184 = vlog2.pop %v183
        %v185 = vmul.f32 %v184, 0.6931472
        %v186 = vmul.f32 -0.5, %v182
        %v187 = vadd.f32 %v186, 1.0
        %v188 = vmul.f32 %v187, %v182
        %v189 = vand.u32 2147483647, %v182
        %vm190 = vcmp.lt.f32.partialorder %v189, 0.0004427343
        %v191 = vsel %vm190, %v188, %v185
        %v192 = vmul.f32 %v181, %v191
        %v193 = vsub.f32 %v192, -20.0
        %v194 = vmul.f32 %v193, 6.35
        %v195 = vmax.f32 %v194, 0.0
        %v196 = vmin.f32 %v195, 254.0
        %v197 = vlaneseq
        %v198 = vand.u32 %v197, 127
        %v199 = vadd.s32 %v198, 128
        %v200 = vcvt.s32.f32 %v198
        %v201 = vcvt.s32.f32 %v199
        %203 = vset.pattern.permute.xlu0 0
        %204 = vperm.xlu0 %203, %v196
        %v205 = vpop.permute.xlu0 %204
        %v207 = vsub.f32 %v205, %v200
        %v208 = vsub.f32 %v205, %v201
        %v209 = vand.u32 2147483647, %v207
        %v210 = vand.u32 2147483647, %v208
        %v211 = vsub.f32 1.0, %v209
        %v212 = vsub.f32 1.0, %v210
        %v213 = vmax.f32 %v211, 0.0
        %v214 = vmax.f32 %v212, 0.0
        %vm215 = vcmask 1039360
        %v216 = vsel %vm215, %v178, -inf
        %v217 = vmax.f32 %v177, %v216
        %218 = vmax.xlane.f32.xlu0 %v217
        %v219 = vpop.xlane.xlu0 %218
        %v220 = vsub.f32 %v177, %v219
        %v221 = vsub.f32 %v178, %v219
        %v222 = vmul.f32 %v220, 1.442695
        %v223 = vpow.pop %v222
        %v224 = vmul.f32 %v221, 1.442695
        %v225 = vpow.pop %v224
        %v226 = vsel %vm215, %v225, 0.0
        %v227 = vadd.f32 %v223, %v226
        %228 = vadd.xlane.f32.xlu0 %v227
        %v229 = vpop.xlane.xlu0 %228
        %v230 = vlog2.pop %v229
        %v231 = vmul.f32 %v230, 0.6931472
        %v232 = vmul.f32 %v213, %v220
        %v233 = vmul.f32 %v214, %v221
        %v234 = vsel %vm215, %v233, 0.0
        %v235 = vadd.f32 %v232, %v234
        %236 = vadd.xlane.f32.xlu0 %v235
        %v237 = vpop.xlane.xlu0 %236
        %v238 = vsub.f32 %v231, %v237
        %v239 = vlaneseq
        %v240 = vshrl.u32 %v239, 7
        %s241 = smul.u32 %s16, 8
        %v242 = vstv %s241
        %v243 = vadd.s32 %v242, %v240
        %vm244 = vcmp.lt.s32.totalorder %v243, 16
        %v245 = vsel %vm244, %v238, 0.0
        %v246 = vrot.slane %v245, 4
        %v247 = vadd.f32 %v245, %v246
        %v248 = vrot.slane %v247, 2
        %v249 = vadd.f32 %v247, %v248
        %v250 = vrot.slane %v249, 1
        %v251 = vadd.f32 %v249, %v250
        %vm252 = vcmp.eq.s32.totalorder %v240, 0
        %v253 = vsel %vm252, %v251, 0.0
        %vm254 = vcmask 7168
        %255 = vst.msk [vmem:[%s176] sm:$0xff] %vm254, %v253
        %p256 = scmp.lt.s32.totalorder %s16, 1
        %s257 = scalar_select %p256, %s16, 1
        %s258 = smul.addr %s257, 8
        %s259 = scalar_lea.vmem %s2, %s258
        // Predicated region
        $region33: #{tpu_custom_call.1} parent=27 // pred_check
          %p260 = pneg %p86
        $region34: #{tpu_custom_call.1} parent=27 // pred_check_branch
          %262 = sbr.rel (%p260) target = $region36
        $region35: #{tpu_custom_call.1} parent=27 // pred_region
          _
        $region36: #{tpu_custom_call.1} parent=27 // pred_fallthru
          _
      $region28: #{tpu_custom_call.1} parent=5 // pred_fallthru
        _
      %p263 = scmp.le.s32.totalorder 2, %s11
      // Predicated region
      $region37: #{tpu_custom_call.1} parent=5 // pred_check
        %p264 = pneg %p263
      $region38: #{tpu_custom_call.1} parent=5 // pred_check_branch
        %266 = sbr.rel (%p264) target = $region40
      $region39: #{tpu_custom_call.1} parent=5 // pred_region
        %s267 = ssub.s32 %s11, 2
        // Predicated region
        $region41: #{tpu_custom_call.1} parent=39 // pred_check
          %p268 = pneg %p92
        $region42: #{tpu_custom_call.1} parent=39 // pred_check_branch
          %270 = sbr.rel (%p268) target = $region44
        $region43: #{tpu_custom_call.1} parent=39 // pred_region
          %p271 = scmp.lt.s32.totalorder %s17, 1
          %s272 = scalar_select %p271, %s17, 1
          %s273 = smul.addr %s272, 8
          %s274 = scalar_lea.vmem %s2, %s273
        $region44: #{tpu_custom_call.1} parent=39 // pred_fallthru
          _
      $region40: #{tpu_custom_call.1} parent=5 // pred_fallthru
        _
    $region6: #{tpu_custom_call.1} parent=1 // loop_footer
      %s15 = sadd.s32 1, %s11
    $region7: #{tpu_custom_call.1} parent=1 // loop_footer_branch
      %10 = sbr.rel target = $region3
    $region8: #{tpu_custom_call.1} parent=1 // loop_exit
      _
    %275 = vsyncpa [#allocation3], 1
    %s276 = scalar_lea.sflag [#allocation3], 1
    %277 = vsyncpa %s276, 1

</llo_original>
